<compile_context>
chip_gen: v6e
topology: v6e:2x2x1
jax: 0.10.0
libtpu: 0.0.40
codegen_flags: <defaults>
</compile_context>

<pallas_src>
import functools

import jax
import jax.numpy as jnp
from jax.experimental import pallas as pl
from jax.experimental.pallas import tpu as pltpu

LANE = 128
_MIB = 1024 * 1024


def _vmem_capacity_bytes():
    try:
        return int(pltpu.get_tpu_info().vmem_capacity_bytes)
    except Exception:
        return 64 * _MIB  # conservative default (v7x per-core VMEM)


# ----------------------------------------------------------------------------
# Main (full-batch-per-slab) kernel: 1-D grid over feature tiles.
# ----------------------------------------------------------------------------
def _bn_flow_kernel(x_ref, params_ref, y_ref, rows_ref, *, momentum, eps, inv_b):
    # x slab: (B, td) — full batch, td features. Padding lanes of a ragged last
    # tile may hold garbage; all math is lane-local and out-of-range writes are
    # dropped by Pallas, so no explicit mask is needed.
    x = x_ref[...].astype(jnp.float32)
    log_gamma = params_ref[0:1, :]                 # (1, td)
    beta = params_ref[1:2, :]
    run_mean = params_ref[2:3, :]
    run_var = params_ref[3:4, :]

    mean = jnp.sum(x, axis=0, keepdims=True) * inv_b            # (1, td)
    centered = x - mean
    var = jnp.sum(centered * centered, axis=0, keepdims=True) * inv_b + eps

    inv_std = jax.lax.rsqrt(var)                   # EUP slot
    scale = jnp.exp(log_gamma) * inv_std
    y_ref[...] = (centered * scale + beta).astype(y_ref.dtype)

    # Packed per-feature rows: [logdet lanes, new running_mean, new running_var].
    rows_ref[0:1, :] = log_gamma - 0.5 * jnp.log(var)
    rows_ref[1:2, :] = run_mean * momentum + mean * (1.0 - momentum)
    rows_ref[2:3, :] = run_var * momentum + var * (1.0 - momentum)


# ----------------------------------------------------------------------------
# Batch-tiled fallback (huge B): pass 1 accumulates sum / sum-of-squares.
# ----------------------------------------------------------------------------
def _bn_stats_kernel(x_ref, params_ref, stats_ref, rows_ref, acc_ref,
                     *, momentum, eps, inv_b, batch, tile_b):
    b = pl.program_id(1)

    @pl.when(b == 0)
    def _():
        acc_ref[...] = jnp.zeros_like(acc_ref)

    x = x_ref[...].astype(jnp.float32)
    row_ids = jax.lax.broadcasted_iota(jnp.int32, x.shape, 0) + b * tile_b
    x = jnp.where(row_ids < batch, x, 0.0)         # mask ragged batch tile
    acc_ref[0:1, :] += jnp.sum(x, axis=0, keepdims=True)
    acc_ref[1:2, :] += jnp.sum(x * x, axis=0, keepdims=True)

    @pl.when(b == pl.num_programs(1) - 1)
    def _():
        log_gamma = params_ref[0:1, :]
        beta = params_ref[1:2, :]
        run_mean = params_ref[2:3, :]
        run_var = params_ref[3:4, :]
        mean = acc_ref[0:1, :] * inv_b
        # Single-pass variance (E[x^2] - mean^2); adequate for flow data.
        var = acc_ref[1:2, :] * inv_b - mean * mean + eps
        scale = jnp.exp(log_gamma) * jax.lax.rsqrt(var)
        stats_ref[0:1, :] = scale
        stats_ref[1:2, :] = beta - mean * scale    # fused shift
        rows_ref[0:1, :] = log_gamma - 0.5 * jnp.log(var)
        rows_ref[1:2, :] = run_mean * momentum + mean * (1.0 - momentum)
        rows_ref[2:3, :] = run_var * momentum + var * (1.0 - momentum)


def _bn_apply_kernel(x_ref, stats_ref, y_ref):
    x = x_ref[...].astype(jnp.float32)
    y_ref[...] = (x * stats_ref[0:1, :] + stats_ref[1:2, :]).astype(y_ref.dtype)


# ----------------------------------------------------------------------------
# Wrapper
# ----------------------------------------------------------------------------
def batchnorm_flow_direct(x, log_gamma, beta, running_mean, running_var,
                          momentum=0.0, eps=1e-5,
                          force_batch_tiled=False, max_batch_tile=None):
    """Training-mode 'direct' forward. Returns (y, logdet, new_rm, new_rv)."""
    B, D = x.shape
    itemsize = jnp.dtype(x.dtype).itemsize
    D_ceil = ((D + LANE - 1) // LANE) * LANE
    scr = 1 if itemsize >= 4 else 2          # f32 temporaries beyond IO buffers

    # Pack the tiny per-feature params/buffers: one (4, D) input slab.
    params = jnp.stack([log_gamma.astype(jnp.float32),
                        beta.astype(jnp.float32),
                        running_mean.astype(jnp.float32),
                        running_var.astype(jnp.float32)])

    cap = _vmem_capacity_bytes()
    budget = cap // 2                        # selection budget (~half of VMEM)

    def est_main(lanes, x_bufs=2):
        return (x_bufs * B * lanes * itemsize        # x input pipeline buffers
                + 2 * B * lanes * itemsize           # y output (double-buffered)
                + 2 * 4 * lanes * 4                  # packed param rows
                + 2 * 3 * lanes * 4                  # packed output rows
                + scr * B * lanes * 4)               # in-kernel f32 temporaries

    per_lane = est_main(1)
    max_lanes = (budget // per_lane) // LANE * LANE

    use_batch_tiled = force_batch_tiled or max_lanes < LANE

    if not use_batch_tiled:
        # ---------------- full-batch slab path ----------------
        if D <= max_lanes and D_ceil <= 3 * LANE:
            td, n_tiles = D, 1               # single full-extent block, no masks
        else:
            td = min(max_lanes, D_ceil, 8 * LANE)      # 1024-lane cap (~86% roofline)
            if td >= D_ceil and D_ceil >= 4 * LANE:
                # Split roughly in half: lets the "parallel" axis shard across
                # both TensorCores on v7x and overlaps DMA with compute.
                td = (-(-(D_ceil // 2) // LANE)) * LANE
            n_tiles = -(-D // td)            # ragged last tile handled by Pallas

        x_bufs = 2
        if cap >= 96 * _MIB and n_tiles >= 4 and est_main(td, 3) <= budget:
            x_bufs = 3                       # extra input buffer on v5e/v6e only

        est = est_main(min(td, D_ceil), x_bufs)
        vmem_limit = int(min(cap - 4 * _MIB, max(2 * est, 32 * _MIB)))

        if x_bufs == 3:
            x_spec = pl.BlockSpec((B, td), lambda i: (0, i),
                                  pipeline_mode=pl.Buffered(3))
        else:
            x_spec = pl.BlockSpec((B, td), lambda i: (0, i))

        cost = pl.CostEstimate(
            flops=6 * B * D + 10 * D,
            transcendentals=3 * D,                           # exp, rsqrt, log
            bytes_accessed=2 * B * D * itemsize + 7 * D * 4)

        kernel = functools.partial(_bn_flow_kernel, momentum=float(momentum),
                                   eps=float(eps), inv_b=1.0 / float(B))

        y, rows = pl.pallas_call(
            kernel,
            out_shape=(jax.ShapeDtypeStruct((B, D), x.dtype),
                       jax.ShapeDtypeStruct((3, D), jnp.float32)),
            grid=(n_tiles,),
            in_specs=[x_spec,
                      pl.BlockSpec((4, td), lambda i: (0, i))],
            out_specs=(pl.BlockSpec((B, td), lambda i: (0, i)),
                       pl.BlockSpec((3, td), lambda i: (0, i))),
            compiler_params=pltpu.CompilerParams(
                dimension_semantics=("parallel",),
                vmem_limit_bytes=vmem_limit),
            cost_estimate=cost,
        )(x, params)

    else:
        # ---------------- batch-tiled fallback (huge B) ----------------
        td = min(4 * LANE, D_ceil)
        fixed = 2 * (4 + 2 + 3) * td * 4 + 2 * td * 4        # rows + acc scratch
        per_row = 4 * td * itemsize + scr * td * 4
        tb = max(int((budget - fixed) // per_row), 8)
        tb = (tb // 8) * 8
        if max_batch_tile is not None:
            tb = min(tb, int(max_batch_tile))
        tb = max(8, tb)
        if tb >= B:
            tb = B
        n_b = -(-B // tb)
        n_f = -(-D // td)

        est = fixed + per_row * tb
        vmem_limit = int(min(cap - 4 * _MIB, max(2 * est, 32 * _MIB)))

        stats_kernel = functools.partial(
            _bn_stats_kernel, momentum=float(momentum), eps=float(eps),
            inv_b=1.0 / float(B), batch=B, tile_b=tb)

        stats, rows = pl.pallas_call(
            stats_kernel,
            out_shape=(jax.ShapeDtypeStruct((2, D), jnp.float32),
                       jax.ShapeDtypeStruct((3, D), jnp.float32)),
            grid=(n_f, n_b),
            in_specs=[pl.BlockSpec((tb, td), lambda f, b: (b, f)),
                      pl.BlockSpec((4, td), lambda f, b: (0, f))],
            out_specs=(pl.BlockSpec((2, td), lambda f, b: (0, f)),
                       pl.BlockSpec((3, td), lambda f, b: (0, f))),
            scratch_shapes=[pltpu.VMEM((2, td), jnp.float32)],
            compiler_params=pltpu.CompilerParams(
                dimension_semantics=("parallel", "arbitrary"),
                vmem_limit_bytes=vmem_limit),
        )(x, params)

        y = pl.pallas_call(
            _bn_apply_kernel,
            out_shape=jax.ShapeDtypeStruct((B, D), x.dtype),
            grid=(n_f, n_b),
            in_specs=[pl.BlockSpec((tb, td), lambda f, b: (b, f)),
                      pl.BlockSpec((2, td), lambda f, b: (0, f))],
            out_specs=pl.BlockSpec((tb, td), lambda f, b: (b, f)),
            compiler_params=pltpu.CompilerParams(
                dimension_semantics=("parallel", "parallel"),
                vmem_limit_bytes=vmem_limit),
        )(x, stats)

    logdet = jnp.sum(rows[0:1, :], axis=-1)          # shape (1,)
    new_rm = rows[1]
    new_rv = rows[2]
    return y, logdet, new_rm, new_rv


# ----------------------------------------------------------------------------
# Pure-JAX reference
# ----------------------------------------------------------------------------
def _reference(x, log_gamma, beta, running_mean, running_var, momentum, eps):
    mean = x.mean(0)
    var = ((x - mean) ** 2).mean(0) + eps
    x_hat = (x - mean) / jnp.sqrt(var)
    y = jnp.exp(log_gamma) * x_hat + beta
    logdet = jnp.sum(log_gamma - 0.5 * jnp.log(var), axis=-1, keepdims=True)
    new_rm = running_mean * momentum + mean * (1.0 - momentum)
    new_rv = running_var * momentum + var * (1.0 - momentum)
    return y, logdet, new_rm, new_rv


def _check(out, ref, atol, rtol=1e-4):
    for a, b in zip(out, ref):
        assert jnp.allclose(a, b, atol=atol, rtol=rtol), (a, b)


if __name__ == "__main__":
    key = jax.random.PRNGKey(0)

    def make(B, D, k):
        kx, kg, kb = jax.random.split(k, 3)
        x = jax.random.normal(kx, (B, D), dtype=jnp.float32)
        lg = 0.1 * jax.random.normal(kg, (D,), dtype=jnp.float32)
        bt = 0.1 * jax.random.normal(kb, (D,), dtype=jnp.float32)
        return x, lg, bt, jnp.zeros((D,), jnp.float32), jnp.ones((D,), jnp.float32)

    # 1) Module-default small shape: single full-extent block, momentum=0.
    k1, k2, k3 = jax.random.split(key, 3)
    args = make(8, 32, k1)
    out = batchnorm_flow_direct(*args, momentum=0.0, eps=1e-5)
    jax.block_until_ready(out)
    _check(out, _reference(*args, 0.0, 1e-5), atol=1e-5, rtol=1e-5)

    # 2) Multi-tile feature grid with a ragged last tile (D=1000), momentum=0.1.
    args = make(64, 1000, k2)
    out = batchnorm_flow_direct(*args, momentum=0.1, eps=1e-5)
    jax.block_until_ready(out)
    _check(out, _reference(*args, 0.1, 1e-5), atol=1e-4, rtol=1e-4)

    # 3) Batch-tiled fallback path (forced), ragged batch and feature tiles.
    args = make(1000, 300, k3)
    out = batchnorm_flow_direct(*args, momentum=0.1, eps=1e-5,
                                force_batch_tiled=True, max_batch_tile=256)
    jax.block_until_ready(out)
    _check(out, _reference(*args, 0.1, 1e-5), atol=1e-2, rtol=1e-3)

    print("KERNEL_OK")
</pallas_src>

<mosaic_0001>
module attributes {stable_mosaic.version = 11 : i64} {
  func.func @_bn_flow_kernel(%arg0: i32, %arg1: memref<8x32xf32, #tpu.memory_space<vmem>>, %arg2: memref<4x32xf32, #tpu.memory_space<vmem>>, %arg3: memref<8x32xf32, #tpu.memory_space<vmem>>, %arg4: memref<3x32xf32, #tpu.memory_space<vmem>>) attributes {dimension_semantics = [#tpu.dimension_semantics<parallel>], iteration_bounds = array<i64: 1>, scalar_prefetch = 0 : i64, scratch_operands = 0 : i64, tpu.core_type = #tpu.core_type<tc>, window_params = [{transform_indices = @transform_0, window_bounds = array<i64: 8, 32>}, {transform_indices = @transform_1, window_bounds = array<i64: 4, 32>}, {transform_indices = @transform_2, window_bounds = array<i64: 8, 32>}, {transform_indices = @transform_3, window_bounds = array<i64: 3, 32>}]} {
    %c0 = arith.constant 0 : index
    %c0_0 = arith.constant 0 : index
    %0 = vector.load %arg1[%c0, %c0_0] : memref<8x32xf32, #tpu.memory_space<vmem>>, vector<8x32xf32>
    %c0_1 = arith.constant 0 : index
    %c0_2 = arith.constant 0 : index
    %1 = vector.load %arg2[%c0_1, %c0_2] : memref<4x32xf32, #tpu.memory_space<vmem>>, vector<1x32xf32>
    %c1 = arith.constant 1 : index
    %c0_3 = arith.constant 0 : index
    %2 = vector.load %arg2[%c1, %c0_3] : memref<4x32xf32, #tpu.memory_space<vmem>>, vector<1x32xf32>
    %c2 = arith.constant 2 : index
    %c0_4 = arith.constant 0 : index
    %3 = vector.load %arg2[%c2, %c0_4] : memref<4x32xf32, #tpu.memory_space<vmem>>, vector<1x32xf32>
    %c3 = arith.constant 3 : index
    %c0_5 = arith.constant 0 : index
    %4 = vector.load %arg2[%c3, %c0_5] : memref<4x32xf32, #tpu.memory_space<vmem>>, vector<1x32xf32>
    %cst = arith.constant dense<0.000000e+00> : vector<32xf32>
    %5 = vector.multi_reduction <add>, %0, %cst [0] : vector<8x32xf32> to vector<32xf32>
    %6 = vector.shape_cast %5 : vector<32xf32> to vector<1x32xf32>
    %cst_6 = arith.constant 1.250000e-01 : f32
    %7 = vector.broadcast %cst_6 : f32 to vector<1x32xf32>
    %8 = arith.mulf %6, %7 : vector<1x32xf32>
    %9 = vector.broadcast %8 : vector<1x32xf32> to vector<8x32xf32>
    %10 = arith.subf %0, %9 : vector<8x32xf32>
    %11 = arith.mulf %10, %10 : vector<8x32xf32>
    %cst_7 = arith.constant dense<0.000000e+00> : vector<32xf32>
    %12 = vector.multi_reduction <add>, %11, %cst_7 [0] : vector<8x32xf32> to vector<32xf32>
    %13 = vector.shape_cast %12 : vector<32xf32> to vector<1x32xf32>
    %cst_8 = arith.constant 1.250000e-01 : f32
    %14 = vector.broadcast %cst_8 : f32 to vector<1x32xf32>
    %15 = arith.mulf %13, %14 : vector<1x32xf32>
    %cst_9 = arith.constant 9.99999974E-6 : f32
    %16 = vector.broadcast %cst_9 : f32 to vector<1x32xf32>
    %17 = arith.addf %15, %16 : vector<1x32xf32>
    %18 = math.rsqrt %17 : vector<1x32xf32>
    %19 = math.exp %1 : vector<1x32xf32>
    %20 = arith.mulf %19, %18 : vector<1x32xf32>
    %21 = vector.broadcast %20 : vector<1x32xf32> to vector<8x32xf32>
    %22 = arith.mulf %10, %21 : vector<8x32xf32>
    %23 = vector.broadcast %2 : vector<1x32xf32> to vector<8x32xf32>
    %24 = arith.addf %22, %23 : vector<8x32xf32>
    %c0_10 = arith.constant 0 : index
    %c0_11 = arith.constant 0 : index
    %25 = vector.load %arg3[%c0_10, %c0_11] : memref<8x32xf32, #tpu.memory_space<vmem>>, vector<8x32xf32>
    tpu.vector_store %arg3[%c0_10, %c0_11], %24 {strides = array<i32>} : memref<8x32xf32, #tpu.memory_space<vmem>>, vector<8x32xf32>,
    %26 = math.log %17 : vector<1x32xf32>
    %cst_12 = arith.constant 5.000000e-01 : f32
    %27 = vector.broadcast %cst_12 : f32 to vector<1x32xf32>
    %28 = arith.mulf %27, %26 : vector<1x32xf32>
    %29 = arith.subf %1, %28 : vector<1x32xf32>
    %c0_13 = arith.constant 0 : index
    %c0_14 = arith.constant 0 : index
    %30 = vector.load %arg4[%c0_13, %c0_14] : memref<3x32xf32, #tpu.memory_space<vmem>>, vector<1x32xf32>
    tpu.vector_store %arg4[%c0_13, %c0_14], %29 {strides = array<i32>} : memref<3x32xf32, #tpu.memory_space<vmem>>, vector<1x32xf32>,
    %cst_15 = arith.constant 0.000000e+00 : f32
    %31 = vector.broadcast %cst_15 : f32 to vector<1x32xf32>
    %32 = arith.mulf %3, %31 : vector<1x32xf32>
    %cst_16 = arith.constant 1.000000e+00 : f32
    %33 = vector.broadcast %cst_16 : f32 to vector<1x32xf32>
    %34 = arith.mulf %8, %33 : vector<1x32xf32>
    %35 = arith.addf %32, %34 : vector<1x32xf32>
    %c1_17 = arith.constant 1 : index
    %c0_18 = arith.constant 0 : index
    %36 = vector.load %arg4[%c1_17, %c0_18] : memref<3x32xf32, #tpu.memory_space<vmem>>, vector<1x32xf32>
    tpu.vector_store %arg4[%c1_17, %c0_18], %35 {strides = array<i32>} : memref<3x32xf32, #tpu.memory_space<vmem>>, vector<1x32xf32>,
    %cst_19 = arith.constant 0.000000e+00 : f32
    %37 = vector.broadcast %cst_19 : f32 to vector<1x32xf32>
    %38 = arith.mulf %4, %37 : vector<1x32xf32>
    %cst_20 = arith.constant 1.000000e+00 : f32
    %39 = vector.broadcast %cst_20 : f32 to vector<1x32xf32>
    %40 = arith.mulf %17, %39 : vector<1x32xf32>
    %41 = arith.addf %38, %40 : vector<1x32xf32>
    %c2_21 = arith.constant 2 : index
    %c0_22 = arith.constant 0 : index
    %42 = vector.load %arg4[%c2_21, %c0_22] : memref<3x32xf32, #tpu.memory_space<vmem>>, vector<1x32xf32>
    tpu.vector_store %arg4[%c2_21, %c0_22], %41 {strides = array<i32>} : memref<3x32xf32, #tpu.memory_space<vmem>>, vector<1x32xf32>,
    return
  }
  func.func @transform_0(%arg0: i32) -> (i32, i32) {
    %c0_i32 = arith.constant 0 : i32
    %c0_i32_0 = arith.constant 0 : i32
    return %c0_i32, %arg0 : i32, i32
  }
  func.func @transform_1(%arg0: i32) -> (i32, i32) {
    %c0_i32 = arith.constant 0 : i32
    %c0_i32_0 = arith.constant 0 : i32
    return %c0_i32, %arg0 : i32, i32
  }
  func.func @transform_2(%arg0: i32) -> (i32, i32) {
    %c0_i32 = arith.constant 0 : i32
    %c0_i32_0 = arith.constant 0 : i32
    return %c0_i32, %arg0 : i32, i32
  }
  func.func @transform_3(%arg0: i32) -> (i32, i32) {
    %c0_i32 = arith.constant 0 : i32
    %c0_i32_0 = arith.constant 0 : i32
    return %c0_i32, %arg0 : i32, i32
  }
}

</mosaic_0001>

<llo_original>
// kernel: tpu_custom_call.1
$region0: #{tpu_custom_call.1}
  #allocation0 [shape = 'u32[]', space=smem, size = 0x4, offset = 0x4, fixed_abs, tag = 'smem constant byte address 0x4 - core index']
  #allocation1 [shape = 'u32[144,128]{1,0:T(1,128)}', space=vmem, size = 0x12000, scoped, tag = 'internal scratch']
  %s0 = inlined_call_operand.hbm [shape: f32[8,32], index: 0, kind: input, shape index: {}]
  %s1 = inlined_call_operand.hbm [shape: f32[4,32], index: 1, kind: input, shape index: {}]
  %s2 = inlined_call_operand.hbm [shape: f32[8,32], index: 2, kind: output, shape index: {0}]
  %s3 = inlined_call_operand.hbm [shape: f32[3,32], index: 3, kind: output, shape index: {1}]
  %4 = xla_tuple %s2, %s3
  %s5 = sld [smem:[#allocation0]]
  $region34: #{tpu_custom_call.1} parent=0
    _
  %s7 = ssub.s32 1, %s5
  %s8 = scalar_select 0, %s7, %s5
  $region1: #{tpu_custom_call.1} parent=0
    #allocation2 [shape = 'u8[4096]{0}', space=vmem, size = 0x1000, scoped, tag = 'input window, operand 0, single buffered']
    #allocation3 [shape = 's32[1]{0}', space=sflag, size = 0x4, scoped, tag = 'scoped memory for tpu_custom_call.1']
    #allocation4 [shape = 's32[1]{0}', space=sflag, size = 0x4, scoped, tag = 'scoped memory for tpu_custom_call.1']
    #allocation5 [shape = 'u8[2048]{0}', space=vmem, size = 0x800, scoped, tag = 'input window, operand 1, single buffered']
    #allocation6 [shape = 's32[1]{0}', space=sflag, size = 0x4, scoped, tag = 'scoped memory for tpu_custom_call.1']
    #allocation7 [shape = 'u8[4096]{0}', space=vmem, size = 0x1000, scoped, tag = 'output window, operand 0, single buffered']
    #allocation8 [shape = 'u8[2048]{0}', space=vmem, size = 0x800, scoped, tag = 'output window, operand 1, single buffered']
    #allocation9 [shape = 's32[1]{0}', space=sflag, size = 0x4, scoped, tag = 'scoped memory for tpu_custom_call.1']
    %9 = vsyncpa [#allocation3], 0
    %10 = vsyncpa [#allocation6], 0
    %11 = vsyncpa [#allocation4], 0
    %12 = vsyncpa [#allocation9], 0
    // Predicated region
    $region2: #{tpu_custom_call.1} parent=1 // pred_check
      _
    $region3: #{tpu_custom_call.1} parent=1 // pred_check_branch
      %14 = sbr.rel (0) target = $region5
    $region4: #{tpu_custom_call.1} parent=1 // pred_region
      %s16 = ssub.s32 128, 128
      %17 = vsyncadd [#allocation3], %s16
      %s19 = sshll.u32 [#allocation2], 4
      %s20 = int_to_ptr.vmem [resolvable:$true] %s19
      %22 = dma.hbm_to_vmem [thread:$0]  %s0, 128, %s20, [#allocation3]
    $region5: #{tpu_custom_call.1} parent=1 // pred_fallthru
      _
    // Predicated region
    $region6: #{tpu_custom_call.1} parent=1 // pred_check
      _
    $region7: #{tpu_custom_call.1} parent=1 // pred_check_branch
      %24 = sbr.rel (0) target = $region9
    $region8: #{tpu_custom_call.1} parent=1 // pred_region
      %s26 = ssub.s32 64, 64
      %27 = vsyncadd [#allocation6], %s26
      %s29 = sshll.u32 [#allocation5], 4
      %s30 = int_to_ptr.vmem [resolvable:$true] %s29
      %32 = dma.hbm_to_vmem [thread:$0]  %s1, 64, %s30, [#allocation6]
    $region9: #{tpu_custom_call.1} parent=1 // pred_fallthru
      _
    // Predicated region
    $region10: #{tpu_custom_call.1} parent=1 // pred_check
      _
    $region11: #{tpu_custom_call.1} parent=1 // pred_check_branch
      %34 = sbr.rel (0) target = $region13
    $region12: #{tpu_custom_call.1} parent=1 // pred_region
      %35 = dma.done [#allocation3], 128
    $region13: #{tpu_custom_call.1} parent=1 // pred_fallthru
      _
    // Predicated region
    $region14: #{tpu_custom_call.1} parent=1 // pred_check
      _
    $region15: #{tpu_custom_call.1} parent=1 // pred_check_branch
      %37 = sbr.rel (0) target = $region17
    $region16: #{tpu_custom_call.1} parent=1 // pred_region
      %38 = dma.done [#allocation6], 64
    $region17: #{tpu_custom_call.1} parent=1 // pred_fallthru
      _
    %v39 = vld [vmem:[#allocation2] sm:$0xff]
    %v40 = vld [vmem:[#allocation5] sm:$0x1]
    %v41 = vld [vmem:[#allocation5 + $0x1] sm:$0x1]
    %v42 = vld [vmem:[#allocation5 + $0x2] sm:$0x1]
    %v43 = vld [vmem:[#allocation5 + $0x3] sm:$0x1]
    %vm44 = vcmask 261120
    %v45 = vsel %vm44, %v39, 0.0
    %v46 = vrot.slane %v45, 4
    %v47 = vadd.f32 %v45, %v46
    %v48 = vrot.slane %v47, 2
    %v49 = vadd.f32 %v47, %v48
    %v50 = vrot.slane %v49, 1
    %v51 = vadd.f32 %v49, %v50
    %v52 = vmul.f32 %v51, 0.125
    %v53 = vsub.f32 %v39, %v52
    %v54 = vmul.f32 %v53, %v53
    %v55 = vsel %vm44, %v54, 0.0
    %v56 = vrot.slane %v55, 4
    %v57 = vadd.f32 %v55, %v56
    %v58 = vrot.slane %v57, 2
    %v59 = vadd.f32 %v57, %v58
    %v60 = vrot.slane %v59, 1
    %v61 = vadd.f32 %v59, %v60
    %v62 = vmul.f32 %v61, 0.125
    %v63 = vadd.f32 %v62, 1e-05
    %v64 = vrsqrt.pop %v63
    %v65 = vmul.f32 %v40, 1.442695
    %v66 = vpow.pop %v65
    %v67 = vmul.f32 %v66, %v64
    %v68 = vlaneseq
    %v69 = vshrl.u32 %v68, 7
    %v70 = vsub.s32 0, %v69
    %v71 = vrot.slane %v67, %v70
    %v72 = vmul.f32 %v53, %v71
    %v73 = vlaneseq
    %v74 = vshrl.u32 %v73, 7
    %v75 = vsub.s32 0, %v74
    %v76 = vrot.slane %v41, %v75
    %v77 = vadd.f32 %v72, %v76
    %78 = vst.msk [vmem:[#allocation7] sm:$0xff] %vm44, %v77
    %v79 = vlog2.pop %v63
    %v80 = vmul.f32 %v79, 0.6931472
    %v81 = vmul.f32 %v80, 0.5
    %v82 = vsub.f32 %v40, %v81
    %vm83 = vcmask 253952
    %84 = vst.msk [vmem:[#allocation8] sm:$0x1] %vm83, %v82
    %v85 = vmul.f32 %v42, 0.0
    %v86 = vadd.f32 %v85, %v52
    %87 = vst.msk [vmem:[#allocation8 + $0x1] sm:$0x1] %vm83, %v86
    %v88 = vmul.f32 %v43, 0.0
    %v89 = vadd.f32 %v88, %v63
    %90 = vst.msk [vmem:[#allocation8 + $0x2] sm:$0x1] %vm83, %v89
    // Predicated region
    $region18: #{tpu_custom_call.1} parent=1 // pred_check
      _
    $region19: #{tpu_custom_call.1} parent=1 // pred_check_branch
      %92 = sbr.rel (0) target = $region21
    $region20: #{tpu_custom_call.1} parent=1 // pred_region
      %s94 = ssub.s32 128, 128
      %95 = vsyncadd [#allocation4], %s94
      %s97 = sshll.u32 [#allocation7], 4
      %s98 = int_to_ptr.vmem [resolvable:$true] %s97
      %100 = dma.vmem_to_hbm [thread:$0]  %s98, 128, %s2, [#allocation4]
    $region21: #{tpu_custom_call.1} parent=1 // pred_fallthru
      _
    // Predicated region
    $region22: #{tpu_custom_call.1} parent=1 // pred_check
      _
    $region23: #{tpu_custom_call.1} parent=1 // pred_check_branch
      %102 = sbr.rel (0) target = $region25
    $region24: #{tpu_custom_call.1} parent=1 // pred_region
      %s104 = ssub.s32 64, 64
      %105 = vsyncadd [#allocation9], %s104
      %s107 = sshll.u32 [#allocation8], 4
      %s108 = int_to_ptr.vmem [resolvable:$true] %s107
      %110 = dma.vmem_to_hbm [thread:$0]  %s108, 64, %s3, [#allocation9]
    $region25: #{tpu_custom_call.1} parent=1 // pred_fallthru
      _
    // Predicated region
    $region26: #{tpu_custom_call.1} parent=1 // pred_check
      _
    $region27: #{tpu_custom_call.1} parent=1 // pred_check_branch
      %112 = sbr.rel (0) target = $region29
    $region28: #{tpu_custom_call.1} parent=1 // pred_region
      %113 = dma.done [#allocation4], 128
    $region29: #{tpu_custom_call.1} parent=1 // pred_fallthru
      _
    // Predicated region
    $region30: #{tpu_custom_call.1} parent=1 // pred_check
      _
    $region31: #{tpu_custom_call.1} parent=1 // pred_check_branch
      %115 = sbr.rel (0) target = $region33
    $region32: #{tpu_custom_call.1} parent=1 // pred_region
      %116 = dma.done [#allocation9], 64
    $region33: #{tpu_custom_call.1} parent=1 // pred_fallthru
      _
    %117 = vsyncpa [#allocation3], 1
    %118 = vsyncpa [#allocation6], 1
    %119 = vsyncpa [#allocation4], 1
    %120 = vsyncpa [#allocation9], 1

</llo_original>
